<compile_context>
chip_gen: v6e
topology: v6e:2x2x1
jax: 0.10.0
libtpu: 0.0.40
codegen_flags: <defaults>
</compile_context>

<pallas_src>
import functools

import jax
import jax.numpy as jnp
from jax.experimental import pallas as pl
from jax.experimental.pallas import tpu as pltpu


def _gated_shift_kernel(x_ref, f_ref, wxs_ref, *rest, fold, frame, c_un):
    """One batch element: fused temporal shift + pointwise conv + self-gating.

    x_ref  : (1, C,  M)        activations, channel-first, M = L*H*W (frame-major).
    f_ref  : (1, Cf, M)        flow channels.
    wxs_ref: (Cout, 2*fold)    pointwise-conv weight (transposed) for the shifted channels.
    wxu_ref: (Cout, C-2*fold)  weight for the unshifted channels (absent if c_un == 0).
    wf_ref : (Cout, Cf)        weight for the flow channels.
    b_ref  : (Cout, 1)         bias.
    o_ref  : (1, Cout, M)      output (lane-dense when M is a multiple of 128).
    xsh_ref: (2*fold, M)       VMEM scratch holding only the temporally shifted channels.
    """
    if c_un > 0:
        wxu_ref, wf_ref, b_ref, o_ref, xsh_ref = rest
    else:
        wf_ref, b_ref, o_ref, xsh_ref = rest
        wxu_ref = None

    C2, M = xsh_ref.shape          # C2 = 2*fold
    S = frame                      # elements per frame (= H*W); frames are contiguous slabs

    # ---- temporal shift (only the 2*fold moving channels; all frames are in-block) -------
    # channels [0, fold): frame l <- frame l+1, last frame zeroed
    xsh_ref[0:fold, 0:M - S] = x_ref[0, 0:fold, S:M]
    xsh_ref[0:fold, M - S:M] = jnp.zeros((fold, S), xsh_ref.dtype)
    # channels [fold, 2*fold): frame l <- frame l-1, first frame zeroed
    xsh_ref[fold:C2, S:M] = x_ref[0, fold:C2, 0:M - S]
    xsh_ref[fold:C2, 0:S] = jnp.zeros((fold, S), xsh_ref.dtype)

    # ---- pointwise conv over [x_shifted ; x_unshifted ; flows] ---------------------------
    y = jnp.dot(wxs_ref[...], xsh_ref[...], preferred_element_type=jnp.float32)
    if c_un > 0:
        # Unshifted channels: consumed directly from the input block (no scratch copy).
        y = y + jnp.dot(wxu_ref[...], x_ref[0, C2:C2 + c_un, :],
                        preferred_element_type=jnp.float32)

    # Tiny flow part (Cf channels) as VPU broadcast-FMAs instead of a K=Cf matmul.
    fl = f_ref[0]                                        # (Cf, M)
    wf = wf_ref[...].astype(jnp.float32)                 # (Cout, Cf)
    for cf in range(fl.shape[0]):                        # static unroll, Cf is tiny
        y = y + wf[:, cf:cf + 1] * fl[cf:cf + 1, :].astype(jnp.float32)
    y = y + b_ref[...].astype(jnp.float32)

    # gating_conv is a deepcopy of net => identical weights => sigmoid(y) * y (in f32).
    o_ref[0] = (jax.nn.sigmoid(y) * y).astype(o_ref.dtype)


def gated_temporal_shift(x, flows, w_x, w_f, bias, *, fold_div=8):
    """x: (B, C, L, H, W), flows: (B, Cf, L, H, W) -> (B, Cout, L, H, W)."""
    B, C, L, H, W = x.shape
    Cf = flows.shape[1]
    Cout = w_x.shape[1]
    S = H * W
    M = L * S
    fold = C // fold_div
    assert fold >= 1, "C must be >= fold_div (otherwise fold == 0 and shift degenerates)"
    C2 = 2 * fold
    assert C2 <= C, "need at least 2*fold channels for the temporal shift"
    c_un = C - C2

    # Channel-first kept end-to-end: only contiguous trailing-dim reshapes here.
    xl = x.reshape(B, C, M)
    fl = flows.reshape(B, Cf, M)
    wxT = jnp.transpose(w_x)            # (Cout, C)   tiny
    wx_sh = wxT[:, :C2]                 # (Cout, 2*fold)
    wfT = jnp.transpose(w_f)            # (Cout, Cf)  tiny
    bcol = bias.reshape(Cout, 1)

    kernel = functools.partial(_gated_shift_kernel, fold=fold, frame=S, c_un=c_un)

    in_arrays = [xl, fl, wx_sh]
    in_specs = [
        pl.BlockSpec((1, C, M), lambda b: (b, 0, 0)),       # activations (read once)
        pl.BlockSpec((1, Cf, M), lambda b: (b, 0, 0)),      # flows
        pl.BlockSpec((Cout, C2), lambda b: (0, 0)),         # W^T for shifted channels
    ]
    if c_un > 0:
        in_arrays.append(wxT[:, C2:])                       # (Cout, C - 2*fold)
        in_specs.append(pl.BlockSpec((Cout, c_un), lambda b: (0, 0)))
    in_arrays += [wfT, bcol]
    in_specs += [
        pl.BlockSpec((Cout, Cf), lambda b: (0, 0)),         # W^T for flow channels
        pl.BlockSpec((Cout, 1), lambda b: (0, 0)),          # bias
    ]

    out = pl.pallas_call(
        kernel,
        out_shape=jax.ShapeDtypeStruct((B, Cout, M), x.dtype),
        grid_spec=pltpu.PrefetchScalarGridSpec(
            num_scalar_prefetch=0,
            grid=(B,),
            in_specs=in_specs,
            out_specs=pl.BlockSpec((1, Cout, M), lambda b: (b, 0, 0)),
            scratch_shapes=[pltpu.VMEM((C2, M), x.dtype)],
        ),
        compiler_params=pltpu.CompilerParams(
            dimension_semantics=("parallel",)),
    )(*in_arrays)

    return out.reshape(B, Cout, L, H, W)


def reference(x, flows, w_x, w_f, bias, *, fold_div=8):
    """Pure-JAX reference matching the PyTorch semantics."""
    B, C, L, H, W = x.shape
    fold = C // fold_div
    xt = jnp.transpose(x, (0, 2, 1, 3, 4))            # (B, L, C, H, W)
    out = jnp.zeros_like(xt)
    out = out.at[:, :-1, :fold].set(xt[:, 1:, :fold])
    out = out.at[:, 1:, fold:2 * fold].set(xt[:, :-1, fold:2 * fold])
    out = out.at[:, :, 2 * fold:].set(xt[:, :, 2 * fold:])
    xs = jnp.transpose(out, (0, 2, 1, 3, 4))          # (B, C, L, H, W)
    inp = jnp.concatenate([xs, flows], axis=1)        # (B, C+Cf, L, H, W)
    w = jnp.concatenate([w_x, w_f], axis=0)           # (C+Cf, Cout)
    y = jnp.einsum('bclhw,co->bolhw', inp, w) + bias.reshape(1, -1, 1, 1, 1)
    return jax.nn.sigmoid(y) * y


if __name__ == "__main__":
    key = jax.random.PRNGKey(0)
    configs = [
        #  B, C, Cf, Cout, L, H, W, fold_div
        (2, 8, 2, 8, 4, 8, 8, 8),       # default fold_div, unshifted channels present
        (1, 16, 2, 12, 3, 8, 16, 4),    # fold > 1, Cout != C
        (1, 8, 2, 8, 3, 8, 16, 2),      # 2*fold == C (no unshifted channels)
    ]
    for (B, C, Cf, Cout, L, H, W, fold_div) in configs:
        key, k1, k2, k3, k4, k5 = jax.random.split(key, 6)
        x = jax.random.normal(k1, (B, C, L, H, W), jnp.float32)
        flows = jax.random.normal(k2, (B, Cf, L, H, W), jnp.float32)
        w_x = jax.random.normal(k3, (C, Cout), jnp.float32) * 0.1
        w_f = jax.random.normal(k4, (Cf, Cout), jnp.float32) * 0.1
        bias = jax.random.normal(k5, (Cout,), jnp.float32) * 0.1

        out = gated_temporal_shift(x, flows, w_x, w_f, bias, fold_div=fold_div)
        out = jax.block_until_ready(out)

        ref = reference(x, flows, w_x, w_f, bias, fold_div=fold_div)
        assert out.shape == (B, Cout, L, H, W)
        assert jnp.allclose(out, ref, atol=2e-5, rtol=2e-5), (B, C, Cout, fold_div)

    print("KERNEL_OK")
</pallas_src>

<mosaic_0001>
module attributes {stable_mosaic.version = 11 : i64} {
  func.func @_gated_shift_kernel(%arg0: i32, %arg1: memref<1x8x256xf32, #tpu.memory_space<vmem>>, %arg2: memref<1x2x256xf32, #tpu.memory_space<vmem>>, %arg3: memref<8x2xf32, #tpu.memory_space<vmem>>, %arg4: memref<8x6xf32, #tpu.memory_space<vmem>>, %arg5: memref<8x2xf32, #tpu.memory_space<vmem>>, %arg6: memref<8x1xf32, #tpu.memory_space<vmem>>, %arg7: memref<1x8x256xf32, #tpu.memory_space<vmem>>, %arg8: memref<2x256xf32, #tpu.memory_space<vmem>>) attributes {dimension_semantics = [#tpu.dimension_semantics<parallel>], iteration_bounds = array<i64: 2>, scalar_prefetch = 0 : i64, scratch_operands = 1 : i64, tpu.core_type = #tpu.core_type<tc>, window_params = [{transform_indices = @transform_0, window_bounds = array<i64: 1, 8, 256>}, {transform_indices = @transform_1, window_bounds = array<i64: 1, 2, 256>}, {pipeline_mode = #tpu.pipeline_mode<synchronous>, transform_indices = @transform_2, window_bounds = array<i64: 8, 2>}, {pipeline_mode = #tpu.pipeline_mode<synchronous>, transform_indices = @transform_3, window_bounds = array<i64: 8, 6>}, {pipeline_mode = #tpu.pipeline_mode<synchronous>, transform_indices = @transform_4, window_bounds = array<i64: 8, 2>}, {pipeline_mode = #tpu.pipeline_mode<synchronous>, transform_indices = @transform_5, window_bounds = array<i64: 8, 1>}, {transform_indices = @transform_6, window_bounds = array<i64: 1, 8, 256>}]} {
    %c0 = arith.constant 0 : index
    %c0_0 = arith.constant 0 : index
    %c64 = arith.constant 64 : index
    %0 = vector.load %arg1[%c0, %c0_0, %c64] : memref<1x8x256xf32, #tpu.memory_space<vmem>>, vector<1x1x192xf32>
    %1 = vector.shape_cast %0 : vector<1x1x192xf32> to vector<1x192xf32>
    %c0_1 = arith.constant 0 : index
    %c0_2 = arith.constant 0 : index
    %2 = vector.load %arg8[%c0_1, %c0_2] : memref<2x256xf32, #tpu.memory_space<vmem>>, vector<1x192xf32>
    tpu.vector_store %arg8[%c0_1, %c0_2], %1 {strides = array<i32>} : memref<2x256xf32, #tpu.memory_space<vmem>>, vector<1x192xf32>,
    %cst = arith.constant 0.000000e+00 : f32
    %3 = vector.broadcast %cst : f32 to vector<1x64xf32>
    %c0_3 = arith.constant 0 : index
    %c192 = arith.constant 192 : index
    %4 = vector.load %arg8[%c0_3, %c192] : memref<2x256xf32, #tpu.memory_space<vmem>>, vector<1x64xf32>
    tpu.vector_store %arg8[%c0_3, %c192], %3 {strides = array<i32>} : memref<2x256xf32, #tpu.memory_space<vmem>>, vector<1x64xf32>,
    %c0_4 = arith.constant 0 : index
    %c1 = arith.constant 1 : index
    %c0_5 = arith.constant 0 : index
    %5 = vector.load %arg1[%c0_4, %c1, %c0_5] : memref<1x8x256xf32, #tpu.memory_space<vmem>>, vector<1x1x192xf32>
    %6 = vector.shape_cast %5 : vector<1x1x192xf32> to vector<1x192xf32>
    %c1_6 = arith.constant 1 : index
    %c64_7 = arith.constant 64 : index
    %7 = vector.load %arg8[%c1_6, %c64_7] : memref<2x256xf32, #tpu.memory_space<vmem>>, vector<1x192xf32>
    tpu.vector_store %arg8[%c1_6, %c64_7], %6 {strides = array<i32>} : memref<2x256xf32, #tpu.memory_space<vmem>>, vector<1x192xf32>,
    %cst_8 = arith.constant 0.000000e+00 : f32
    %8 = vector.broadcast %cst_8 : f32 to vector<1x64xf32>
    %c1_9 = arith.constant 1 : index
    %c0_10 = arith.constant 0 : index
    %9 = vector.load %arg8[%c1_9, %c0_10] : memref<2x256xf32, #tpu.memory_space<vmem>>, vector<1x64xf32>
    tpu.vector_store %arg8[%c1_9, %c0_10], %8 {strides = array<i32>} : memref<2x256xf32, #tpu.memory_space<vmem>>, vector<1x64xf32>,
    %c0_11 = arith.constant 0 : index
    %c0_12 = arith.constant 0 : index
    %10 = vector.load %arg3[%c0_11, %c0_12] : memref<8x2xf32, #tpu.memory_space<vmem>>, vector<8x2xf32>
    %c0_13 = arith.constant 0 : index
    %c0_14 = arith.constant 0 : index
    %11 = vector.load %arg8[%c0_13, %c0_14] : memref<2x256xf32, #tpu.memory_space<vmem>>, vector<2x256xf32>
    %cst_15 = arith.constant dense<0.000000e+00> : vector<8x256xf32>
    %12 = tpu.matmul %10, %11, %cst_15 {dimension_numbers = #tpu.dot_dimension_numbers<[1], [0], [0], [1], [0, 0, 1, 1], [], []>} : vector<8x2xf32>, vector<2x256xf32>, vector<8x256xf32> -> vector<8x256xf32>
    %c0_16 = arith.constant 0 : index
    %c0_17 = arith.constant 0 : index
    %13 = vector.load %arg4[%c0_16, %c0_17] : memref<8x6xf32, #tpu.memory_space<vmem>>, vector<8x6xf32>
    %c0_18 = arith.constant 0 : index
    %c2 = arith.constant 2 : index
    %c0_19 = arith.constant 0 : index
    %14 = vector.load %arg1[%c0_18, %c2, %c0_19] : memref<1x8x256xf32, #tpu.memory_space<vmem>>, vector<1x6x256xf32>
    %15 = vector.shape_cast %14 : vector<1x6x256xf32> to vector<6x256xf32>
    %cst_20 = arith.constant dense<0.000000e+00> : vector<8x256xf32>
    %16 = tpu.matmul %13, %15, %cst_20 {dimension_numbers = #tpu.dot_dimension_numbers<[1], [0], [0], [1], [0, 0, 1, 1], [], []>} : vector<8x6xf32>, vector<6x256xf32>, vector<8x256xf32> -> vector<8x256xf32>
    %17 = arith.addf %12, %16 : vector<8x256xf32>
    %c0_21 = arith.constant 0 : index
    %c0_22 = arith.constant 0 : index
    %c0_23 = arith.constant 0 : index
    %18 = vector.load %arg2[%c0_21, %c0_22, %c0_23] : memref<1x2x256xf32, #tpu.memory_space<vmem>>, vector<1x2x256xf32>
    %19 = vector.shape_cast %18 : vector<1x2x256xf32> to vector<2x256xf32>
    %c0_24 = arith.constant 0 : index
    %c0_25 = arith.constant 0 : index
    %20 = vector.load %arg5[%c0_24, %c0_25] : memref<8x2xf32, #tpu.memory_space<vmem>>, vector<8x2xf32>
    %21 = vector.extract_strided_slice %20 {offsets = [0, 0], sizes = [8, 1], strides = [1, 1]} : vector<8x2xf32> to vector<8x1xf32>
    %22 = vector.extract_strided_slice %19 {offsets = [0, 0], sizes = [1, 256], strides = [1, 1]} : vector<2x256xf32> to vector<1x256xf32>
    %23 = vector.broadcast %21 : vector<8x1xf32> to vector<8x256xf32>
    %24 = vector.broadcast %22 : vector<1x256xf32> to vector<8x256xf32>
    %25 = arith.mulf %23, %24 : vector<8x256xf32>
    %26 = arith.addf %17, %25 : vector<8x256xf32>
    %27 = vector.extract_strided_slice %20 {offsets = [0, 1], sizes = [8, 1], strides = [1, 1]} : vector<8x2xf32> to vector<8x1xf32>
    %28 = vector.extract_strided_slice %19 {offsets = [1, 0], sizes = [1, 256], strides = [1, 1]} : vector<2x256xf32> to vector<1x256xf32>
    %29 = vector.broadcast %27 : vector<8x1xf32> to vector<8x256xf32>
    %30 = vector.broadcast %28 : vector<1x256xf32> to vector<8x256xf32>
    %31 = arith.mulf %29, %30 : vector<8x256xf32>
    %32 = arith.addf %26, %31 : vector<8x256xf32>
    %c0_26 = arith.constant 0 : index
    %c0_27 = arith.constant 0 : index
    %33 = vector.load %arg6[%c0_26, %c0_27] : memref<8x1xf32, #tpu.memory_space<vmem>>, vector<8x1xf32>
    %34 = vector.broadcast %33 : vector<8x1xf32> to vector<8x256xf32>
    %35 = arith.addf %32, %34 : vector<8x256xf32>
    %36 = arith.negf %35 : vector<8x256xf32>
    %37 = math.exp %36 : vector<8x256xf32>
    %cst_28 = arith.constant 1.000000e+00 : f32
    %38 = vector.broadcast %cst_28 : f32 to vector<8x256xf32>
    %39 = arith.addf %38, %37 : vector<8x256xf32>
    %40 = arith.divf %38, %39 : vector<8x256xf32>
    %41 = arith.mulf %40, %35 : vector<8x256xf32>
    %c0_29 = arith.constant 0 : index
    %c0_30 = arith.constant 0 : index
    %c0_31 = arith.constant 0 : index
    %42 = vector.load %arg7[%c0_29, %c0_30, %c0_31] : memref<1x8x256xf32, #tpu.memory_space<vmem>>, vector<1x8x256xf32>
    %43 = vector.shape_cast %42 : vector<1x8x256xf32> to vector<8x256xf32>
    %44 = vector.shape_cast %41 : vector<8x256xf32> to vector<1x8x256xf32>
    tpu.vector_store %arg7[%c0_29, %c0_30, %c0_31], %44 {strides = array<i32>} : memref<1x8x256xf32, #tpu.memory_space<vmem>>, vector<1x8x256xf32>,
    return
  }
  func.func @transform_0(%arg0: i32) -> (i32, i32, i32) {
    %c0_i32 = arith.constant 0 : i32
    %c0_i32_0 = arith.constant 0 : i32
    %c0_i32_1 = arith.constant 0 : i32
    return %arg0, %c0_i32, %c0_i32_0 : i32, i32, i32
  }
  func.func @transform_1(%arg0: i32) -> (i32, i32, i32) {
    %c0_i32 = arith.constant 0 : i32
    %c0_i32_0 = arith.constant 0 : i32
    %c0_i32_1 = arith.constant 0 : i32
    return %arg0, %c0_i32, %c0_i32_0 : i32, i32, i32
  }
  func.func @transform_2(%arg0: i32) -> (i32, i32) {
    %c0_i32 = arith.constant 0 : i32
    %c0_i32_0 = arith.constant 0 : i32
    %c0_i32_1 = arith.constant 0 : i32
    return %c0_i32, %c0_i32_0 : i32, i32
  }
  func.func @transform_3(%arg0: i32) -> (i32, i32) {
    %c0_i32 = arith.constant 0 : i32
    %c0_i32_0 = arith.constant 0 : i32
    %c0_i32_1 = arith.constant 0 : i32
    return %c0_i32, %c0_i32_0 : i32, i32
  }
  func.func @transform_4(%arg0: i32) -> (i32, i32) {
    %c0_i32 = arith.constant 0 : i32
    %c0_i32_0 = arith.constant 0 : i32
    %c0_i32_1 = arith.constant 0 : i32
    return %c0_i32, %c0_i32_0 : i32, i32
  }
  func.func @transform_5(%arg0: i32) -> (i32, i32) {
    %c0_i32 = arith.constant 0 : i32
    %c0_i32_0 = arith.constant 0 : i32
    %c0_i32_1 = arith.constant 0 : i32
    return %c0_i32, %c0_i32_0 : i32, i32
  }
  func.func @transform_6(%arg0: i32) -> (i32, i32, i32) {
    %c0_i32 = arith.constant 0 : i32
    %c0_i32_0 = arith.constant 0 : i32
    %c0_i32_1 = arith.constant 0 : i32
    return %arg0, %c0_i32, %c0_i32_0 : i32, i32, i32
  }
}

</mosaic_0001>

<llo_original>
// kernel: tpu_custom_call.1
$region0: #{tpu_custom_call.1}
  #allocation0 [shape = 'u32[]', space=smem, size = 0x4, offset = 0x4, fixed_abs, tag = 'smem constant byte address 0x4 - core index']
  #allocation1 [shape = 'u32[144,128]{1,0:T(1,128)}', space=vmem, size = 0x12000, scoped, tag = 'internal scratch']
  #allocation2 [shape = 'f32[2,256]{1,0:T(2,128)}', space=vmem, size = 0x800, scoped, tag = 'scratch operand']
  %s0 = inlined_call_operand.hbm [shape: f32[2,8,256], index: 0, kind: input, shape index: {}]
  %s1 = inlined_call_operand.vmem [shape: f32[2,2,256], index: 1, kind: input, shape index: {}]
  %s2 = inlined_call_operand.vmem [shape: f32[8,2], index: 2, kind: input, shape index: {}]
  %s3 = inlined_call_operand.vmem [shape: f32[8,6], index: 3, kind: input, shape index: {}]
  %s4 = inlined_call_operand.vmem [shape: f32[8,2], index: 4, kind: input, shape index: {}]
  %s5 = inlined_call_operand.vmem [shape: f32[8,1], index: 5, kind: input, shape index: {}]
  %s6 = inlined_call_operand.hbm [shape: f32[2,8,256], index: 6, kind: output, shape index: {}]
  %s7 = sld [smem:[#allocation0]]
  $region61: #{tpu_custom_call.1} parent=0
    _
  %s9 = ssub.s32 1, %s7
  %s10 = scalar_select 0, %s9, %s7
  $region1: #{tpu_custom_call.1} parent=0
    #allocation3 [shape = 'u8[16384]{0}', space=vmem, size = 0x4000, scoped, tag = 'input window, operand 0']
    #allocation4 [shape = 's32[2]{0}', space=sflag, size = 0x8, scoped, tag = 'scoped memory for tpu_custom_call.1']
    #allocation5 [shape = 's32[2]{0}', space=sflag, size = 0x8, scoped, tag = 'scoped memory for tpu_custom_call.1']
    #allocation6 [shape = 'u8[16384]{0}', space=vmem, size = 0x4000, scoped, tag = 'output window, operand 0']
    %11 = vsyncpa [#allocation4], 0
    %s12 = scalar_lea.sflag [#allocation4], 1
    %13 = vsyncpa %s12, 0
    %14 = vsyncpa [#allocation5], 0
    %s15 = scalar_lea.sflag [#allocation5], 1
    %16 = vsyncpa %s15, 0
    loop: start=0, step=1, limit=4
    $region2: #{tpu_custom_call.1} parent=1 // loop_pre_header
      _
    $region3: #{tpu_custom_call.1} parent=1 // loop_header
      %s18 = sphi 0, %s22
      %p19 = scmp.ge.s32.totalorder %s18, 4
      %s28 = sphi 0, %s30
      %s31 = sphi 0, %s28
      %s32 = sphi 0, %s31
      %s48 = sphi 0, %s32
      %s54 = sphi 0, %s56
      %s57 = sphi 0, %s54
      %s58 = sphi 0, %s57
      %s74 = sphi 0, %s58
      %s78 = sphi 0, %s78
      %s80 = sphi 0, %s78
      %s81 = sphi 0, %s80
      %s95 = sphi 0, %s81
      %s99 = sphi 0, %s99
      %s101 = sphi 0, %s99
      %s102 = sphi 0, %s101
      %s116 = sphi 0, %s102
      %s120 = sphi 0, %s120
      %s122 = sphi 0, %s120
      %s123 = sphi 0, %s122
      %s137 = sphi 0, %s123
      %s141 = sphi 0, %s141
      %s143 = sphi 0, %s141
      %s144 = sphi 0, %s143
      %s158 = sphi 0, %s144
      %s164 = sphi 0, %s166
      %s167 = sphi 0, %s164
      %s168 = sphi 0, %s167
      %s184 = sphi 0, %s168
    $region4: #{tpu_custom_call.1} parent=1 // loop_header_branch
      %21 = sbr.rel (%p19) target = $region8
    $region5: #{tpu_custom_call.1} parent=1 // loop_body
      %s23 = ssub.s32 %s18, 1
      %s24 = ssub.s32 %s18, 2
      %s25 = sadd.s32 %s18, 1
      %s26 = ssub.s32 %s18, %s25
      %p27 = scmp.eq.s32.totalorder %s26, 0
      %s29 = sadd.s32 %s28, 1
      %s30 = scalar_select %p27, %s28, %s29
      %p33 = pneg %p27
      %p34 = scmp.eq.s32.totalorder %s18, 1
      %p35 = por %p33, %p34
      %p36 = scmp.ne.s32.totalorder %s28, %s31
      %p37 = scmp.eq.s32.totalorder %s18, 0
      %p38 = por %p36, %p37
      %p39 = scmp.ne.s32.totalorder %s28, %s31
      %p40 = scmp.eq.s32.totalorder %s23, 1
      %p41 = por %p39, %p40
      %p42 = scmp.ne.s32.totalorder %s31, %s32
      %p43 = scmp.eq.s32.totalorder %s23, 0
      %p44 = por %p42, %p43
      %p45 = scmp.ne.s32.totalorder %s31, %s32
      %p46 = scmp.eq.s32.totalorder %s24, 1
      %p47 = por %p45, %p46
      %p49 = scmp.ne.s32.totalorder %s32, %s48
      %p50 = scmp.eq.s32.totalorder %s24, 0
      %p51 = por %p49, %p50
      %s52 = ssub.s32 %s18, %s25
      %p53 = scmp.eq.s32.totalorder %s52, 0
      %s55 = sadd.s32 %s54, 1
      %s56 = scalar_select %p53, %s54, %s55
      %p59 = pneg %p53
      %p60 = scmp.eq.s32.totalorder %s18, 1
      %p61 = por %p59, %p60
      %p62 = scmp.ne.s32.totalorder %s54, %s57
      %p63 = scmp.eq.s32.totalorder %s18, 0
      %p64 = por %p62, %p63
      %p65 = scmp.ne.s32.totalorder %s54, %s57
      %p66 = scmp.eq.s32.totalorder %s23, 1
      %p67 = por %p65, %p66
      %p68 = scmp.ne.s32.totalorder %s57, %s58
      %p69 = scmp.eq.s32.totalorder %s23, 0
      %p70 = por %p68, %p69
      %p71 = scmp.ne.s32.totalorder %s57, %s58
      %p72 = scmp.eq.s32.totalorder %s24, 1
      %p73 = por %p71, %p72
      %p75 = scmp.ne.s32.totalorder %s58, %s74
      %p76 = scmp.eq.s32.totalorder %s24, 0
      %p77 = por %p75, %p76
      %s79 = sadd.s32 %s78, 1
      %p82 = scmp.eq.s32.totalorder %s18, 1
      %p83 = scmp.ne.s32.totalorder %s78, %s80
      %p84 = scmp.eq.s32.totalorder %s18, 0
      %p85 = por %p83, %p84
      %p86 = scmp.ne.s32.totalorder %s78, %s80
      %p87 = scmp.eq.s32.totalorder %s23, 1
      %p88 = por %p86, %p87
      %p89 = scmp.ne.s32.totalorder %s80, %s81
      %p90 = scmp.eq.s32.totalorder %s23, 0
      %p91 = por %p89, %p90
      %p92 = scmp.ne.s32.totalorder %s80, %s81
      %p93 = scmp.eq.s32.totalorder %s24, 1
      %p94 = por %p92, %p93
      %p96 = scmp.ne.s32.totalorder %s81, %s95
      %p97 = scmp.eq.s32.totalorder %s24, 0
      %p98 = por %p96, %p97
      %s100 = sadd.s32 %s99, 1
      %p103 = scmp.eq.s32.totalorder %s18, 1
      %p104 = scmp.ne.s32.totalorder %s99, %s101
      %p105 = scmp.eq.s32.totalorder %s18, 0
      %p106 = por %p104, %p105
      %p107 = scmp.ne.s32.totalorder %s99, %s101
      %p108 = scmp.eq.s32.totalorder %s23, 1
      %p109 = por %p107, %p108
      %p110 = scmp.ne.s32.totalorder %s101, %s102
      %p111 = scmp.eq.s32.totalorder %s23, 0
      %p112 = por %p110, %p111
      %p113 = scmp.ne.s32.totalorder %s101, %s102
      %p114 = scmp.eq.s32.totalorder %s24, 1
      %p115 = por %p113, %p114
      %p117 = scmp.ne.s32.totalorder %s102, %s116
      %p118 = scmp.eq.s32.totalorder %s24, 0
      %p119 = por %p117, %p118
      %s121 = sadd.s32 %s120, 1
      %p124 = scmp.eq.s32.totalorder %s18, 1
      %p125 = scmp.ne.s32.totalorder %s120, %s122
      %p126 = scmp.eq.s32.totalorder %s18, 0
      %p127 = por %p125, %p126
      %p128 = scmp.ne.s32.totalorder %s120, %s122
      %p129 = scmp.eq.s32.totalorder %s23, 1
      %p130 = por %p128, %p129
      %p131 = scmp.ne.s32.totalorder %s122, %s123
      %p132 = scmp.eq.s32.totalorder %s23, 0
      %p133 = por %p131, %p132
      %p134 = scmp.ne.s32.totalorder %s122, %s123
      %p135 = scmp.eq.s32.totalorder %s24, 1
      %p136 = por %p134, %p135
      %p138 = scmp.ne.s32.totalorder %s123, %s137
      %p139 = scmp.eq.s32.totalorder %s24, 0
      %p140 = por %p138, %p139
      %s142 = sadd.s32 %s141, 1
      %p145 = scmp.eq.s32.totalorder %s18, 1
      %p146 = scmp.ne.s32.totalorder %s141, %s143
      %p147 = scmp.eq.s32.totalorder %s18, 0
      %p148 = por %p146, %p147
      %p149 = scmp.ne.s32.totalorder %s141, %s143
      %p150 = scmp.eq.s32.totalorder %s23, 1
      %p151 = por %p149, %p150
      %p152 = scmp.ne.s32.totalorder %s143, %s144
      %p153 = scmp.eq.s32.totalorder %s23, 0
      %p154 = por %p152, %p153
      %p155 = scmp.ne.s32.totalorder %s143, %s144
      %p156 = scmp.eq.s32.totalorder %s24, 1
      %p157 = por %p155, %p156
      %p159 = scmp.ne.s32.totalorder %s144, %s158
      %p160 = scmp.eq.s32.totalorder %s24, 0
      %p161 = por %p159, %p160
      %s162 = ssub.s32 %s18, %s25
      %p163 = scmp.eq.s32.totalorder %s162, 0
      %s165 = sadd.s32 %s164, 1
      %s166 = scalar_select %p163, %s164, %s165
      %p169 = pneg %p163
      %p170 = scmp.eq.s32.totalorder %s18, 1
      %p171 = por %p169, %p170
      %p172 = scmp.ne.s32.totalorder %s164, %s167
      %p173 = scmp.eq.s32.totalorder %s18, 0
      %p174 = por %p172, %p173
      %p175 = scmp.ne.s32.totalorder %s164, %s167
      %p176 = scmp.eq.s32.totalorder %s23, 1
      %p177 = por %p175, %p176
      %p178 = scmp.ne.s32.totalorder %s167, %s168
      %p179 = scmp.eq.s32.totalorder %s23, 0
      %p180 = por %p178, %p179
      %p181 = scmp.ne.s32.totalorder %s167, %s168
      %p182 = scmp.eq.s32.totalorder %s24, 1
      %p183 = por %p181, %p182
      %p185 = scmp.ne.s32.totalorder %s168, %s184
      %p186 = scmp.eq.s32.totalorder %s24, 0
      %p187 = por %p185, %p186
      %p188 = scmp.le.s32.totalorder 1, %s18
      %p189 = scmp.lt.s32.totalorder %s18, 3
      %p190 = pnand %p188, %p189
      %p191 = pneg %p190
      // Predicated region
      $region9: #{tpu_custom_call.1} parent=5 // pred_check
        _
      $region10: #{tpu_custom_call.1} parent=5 // pred_check_branch
        %193 = sbr.rel (%p190) target = $region12
      $region11: #{tpu_custom_call.1} parent=5 // pred_region
        %s194 = ssub.s32 %s18, 1
        // Predicated region
        $region13: #{tpu_custom_call.1} parent=11 // pred_check
          %p195 = pneg %p91
        $region14: #{tpu_custom_call.1} parent=11 // pred_check_branch
          %197 = sbr.rel (%p195) target = $region16
        $region15: #{tpu_custom_call.1} parent=11 // pred_region
          _
        $region16: #{tpu_custom_call.1} parent=11 // pred_fallthru
          _
        // Predicated region
        $region17: #{tpu_custom_call.1} parent=11 // pred_check
          %p198 = pneg %p112
        $region18: #{tpu_custom_call.1} parent=11 // pred_check_branch
          %200 = sbr.rel (%p198) target = $region20
        $region19: #{tpu_custom_call.1} parent=11 // pred_region
          _
        $region20: #{tpu_custom_call.1} parent=11 // pred_fallthru
          _
        // Predicated region
        $region21: #{tpu_custom_call.1} parent=11 // pred_check
          %p201 = pneg %p133
        $region22: #{tpu_custom_call.1} parent=11 // pred_check_branch
          %203 = sbr.rel (%p201) target = $region24
        $region23: #{tpu_custom_call.1} parent=11 // pred_region
          _
        $region24: #{tpu_custom_call.1} parent=11 // pred_fallthru
          _
        // Predicated region
        $region25: #{tpu_custom_call.1} parent=11 // pred_check
          %p204 = pneg %p154
        $region26: #{tpu_custom_call.1} parent=11 // pred_check_branch
          %206 = sbr.rel (%p204) target = $region28
        $region27: #{tpu_custom_call.1} parent=11 // pred_region
          _
        $region28: #{tpu_custom_call.1} parent=11 // pred_fallthru
          _
      $region12: #{tpu_custom_call.1} parent=5 // pred_fallthru
        _
      %p207 = scmp.lt.s32.totalorder %s18, 2
      // Predicated region
      $region29: #{tpu_custom_call.1} parent=5 // pred_check
        %p208 = pneg %p207
      $region30: #{tpu_custom_call.1} parent=5 // pred_check_branch
        %210 = sbr.rel (%p208) target = $region32
      $region31: #{tpu_custom_call.1} parent=5 // pred_region
        // Predicated region
        $region33: #{tpu_custom_call.1} parent=31 // pred_check
          %p211 = pneg %p38
        $region34: #{tpu_custom_call.1} parent=31 // pred_check_branch
          %213 = sbr.rel (%p211) target = $region36
        $region35: #{tpu_custom_call.1} parent=31 // pred_region
          %s214 = sand.u32 %s28, 1
          %s215 = scalar_lea.sflag [#allocation4], %s214
          %s216 = sand.u32 %s28, 1
          %s217 = smul.addr %s216, 16
          %s218 = scalar_lea.vmem [#allocation3], %s217
          %s220 = ssub.s32 256, 256
          %221 = vsyncadd %s215, %s220
          %s222 = smul.addr %s18, 2
          %s223 = smul.addr %s222, 128
          %s224 = scalar_lea.hbm %s0, %s223
          %s226 = sshll.u32 %s218, 4
          %s227 = int_to_ptr.vmem [resolvable:$true] %s226
          %229 = dma.hbm_to_vmem [thread:$0]  %s224, 256, %s227, %s215
        $region36: #{tpu_custom_call.1} parent=31 // pred_fallthru
          _
        // Predicated region
        $region37: #{tpu_custom_call.1} parent=31 // pred_check
          %p230 = pneg %p64
        $region38: #{tpu_custom_call.1} parent=31 // pred_check_branch
          %232 = sbr.rel (%p230) target = $region40
        $region39: #{tpu_custom_call.1} parent=31 // pred_region
          %p233 = scmp.lt.s32.totalorder %s18, 1
          %s234 = scalar_select %p233, %s18, 1
          %s235 = smul.addr %s234, 2
          %s236 = smul.addr %s235, 2
          %s237 = scalar_lea.vmem %s1, %s236
        $region40: #{tpu_custom_call.1} parent=31 // pred_fallthru
          _
      $region32: #{tpu_custom_call.1} parent=5 // pred_fallthru
        _
      %p238 = scmp.le.s32.totalorder 1, %s18
      %p239 = scmp.lt.s32.totalorder %s18, 3
      %p240 = pnand %p238, %p239
      %p241 = pneg %p240
      // Predicated region
      $region41: #{tpu_custom_call.1} parent=5 // pred_check
        _
      $region42: #{tpu_custom_call.1} parent=5 // pred_check_branch
        %243 = sbr.rel (%p240) target = $region44
      $region43: #{tpu_custom_call.1} parent=5 // pred_region
        %s244 = ssub.s32 %s18, 1
        %s245 = sand.u32 %s31, 1
        %s246 = scalar_lea.sflag [#allocation4], %s245
        %s247 = sand.u32 %s31, 1
        %s248 = smul.addr %s247, 16
        %s249 = scalar_lea.vmem [#allocation3], %s248
        // Predicated region
        $region45: #{tpu_custom_call.1} parent=43 // pred_check
          %p250 = pneg %p44
        $region46: #{tpu_custom_call.1} parent=43 // pred_check_branch
          %252 = sbr.rel (%p250) target = $region48
        $region47: #{tpu_custom_call.1} parent=43 // pred_region
          %253 = dma.done %s246, 256
        $region48: #{tpu_custom_call.1} parent=43 // pred_fallthru
          _
        %s254 = sand.u32 %s31, 1
        %s255 = scalar_lea.sflag [#allocation4], %s254
        %s256 = sand.u32 %s31, 1
        %s257 = smul.addr %s256, 16
        %s258 = scalar_lea.vmem [#allocation3], %s257
        %p259 = pneg %p44
        %p260 = pneg %p41
        %p261 = scmp.lt.s32.totalorder %s23, 1
        %s262 = scalar_select %p261, %s23, 1
        %s263 = smul.addr %s262, 2
        %s264 = smul.addr %s263, 2
        %s265 = scalar_lea.vmem %s1, %s264
        %p266 = pneg %p70
        %p267 = pneg %p67
        %p268 = pneg %p91
        %p269 = pneg %p88
        %p270 = pneg %p112
        %p271 = pneg %p109
        %p272 = pneg %p133
        %p273 = pneg %p130
        %p274 = pneg %p154
        %p275 = pneg %p151
        %p276 = pneg %p180
        %p277 = pneg %p177
        %s278 = sand.u32 %s167, 1
        %s279 = scalar_lea.sflag [#allocation5], %s278
        %s280 = sand.u32 %s167, 1
        %s281 = smul.addr %s280, 16
        %s282 = scalar_lea.vmem [#allocation6], %s281
        %p283 = scmp.lt.s32.totalorder %s23, 1
        %s284 = scalar_select %p283, %s23, 1
        %s285 = smul.addr %s284, 2
        %s286 = smul.addr %s285, 2
        %s287 = scalar_lea.vmem %s1, %s286
        %v288 = vld [vmem:[%s249] ss:$8 sm:$0x3]
        %290 = vrot.lane.b32.xlu0 %v288, 64
        %v291 = vpop.permute.xlu0 %290
        %v292 = vrot.slane %v291, 1
        %vm293 = vcmask 523264
        %v294 = vsel %vm293, %v291, %v292
        %v296 = vlaneseq
        %vm297 = vcmp.ge.s32.totalorder %v296, 0
        %vm298 = vcmp.lt.s32.totalorder %v296, 192
        %vm299 = vmand %vm297, %vm298
        %300 = vst.msk [vmem:[#allocation2] ss:$2 sm:$0x3] %vm299, %v294
        %vm301 = vcmask 1040896
        %302 = vst.msk [vmem:[#allocation2 + $0x2] sm:$0x1] %vm301, 0.0
        %s303 = scalar_lea.vmem %s249, 1 [#allocation3]
        %v304 = vld [vmem:[%s303] ss:$8 sm:$0x3]
        %306 = vrot.lane.b32.xlu0 %v304, 64
        %v307 = vpop.permute.xlu0 %306
        %v308 = vrot.slane %v307, 7
        %v309 = vsel %vm293, %v308, %v307
        %vm311 = vcmp.ge.s32.totalorder %v296, 64
        %vm312 = vcmp.lt.s32.totalorder %v296, 256
        %vm313 = vmand %vm311, %vm312
        %s314 = scalar_lea.vmem [#allocation2], 1
        %315 = vst.msk [vmem:[%s314] ss:$2 sm:$0x3] %vm313, %v309
        %vm316 = vcmask 516096
        %317 = vst.msk [vmem:[#allocation2 + $0x1] sm:$0x1] %vm316, 0.0
        %v318 = vld [vmem:[%s2] sm:$0xff]
        %v319 = vld [vmem:[#allocation2] sm:$0xf]
        %v320 = vld [vmem:[%s3] sm:$0xff]
        %v321 = vld [vmem:[%s249] sm:$0xfc]
        %v322 = vld [vmem:[%s249 + $0x8] sm:$0xfc]
        %v325 = vrot.slane %v321, 2
        %v326 = vrot.slane %v322, 2
        %vm327 = vcmask 48128
        %v329 = vsel %vm327, %v320, 0
        %vm331 = vcmask 1045504
        %v332 = vsel %vm331, %v325, 0
        %v334 = vsel %vm331, %v326, 0
        %336 = vmatprep.subr.mxu0 0.0
        %337 = vmatpush1.msra.mxu0 0.0
        %338 = vmatprep.subr.mxu0 0.0
        %339 = vmatpush1.msra.mxu0 0.0
        %340 = vmatprep.subr.mxu0 0.0
        %341 = vmatpush1.msra.mxu0 0.0
        %342 = vmatprep.subr.mxu0 0.0
        %343 = vmatpush1.msra.mxu0 0.0
        %344 = vmatprep.subr.mxu0 0.0
        %345 = vmatpush1.msra.mxu0 0.0
        %346 = vmatprep.subr.mxu0 0.0
        %347 = vmatpush1.msra.mxu0 0.0
        %348 = vmatprep.subr.mxu0 0.0
        %349 = vmatpush1.msra.mxu0 0.0
        %350 = vmatprep.subr.mxu0 0.0
        %351 = vmatpush1.msra.mxu0 0.0
        %352 = vmatprep.subr.mxu0 0.0
        %353 = vmatpush1.msra.mxu0 0.0
        %354 = vmatprep.subr.mxu0 0.0
        %355 = vmatpush1.msra.mxu0 0.0
        %356 = vmatprep.subr.mxu0 0.0
        %357 = vmatpush1.msra.mxu0 0.0
        %358 = vmatprep.subr.mxu0 0.0
        %359 = vmatpush1.msra.mxu0 0.0
        %360 = vmatprep.subr.mxu0 0.0
        %361 = vmatpush1.msra.mxu0 0.0
        %362 = vmatprep.subr.mxu0 0.0
        %363 = vmatpush1.msra.mxu0 0.0
        %364 = vmatprep.subr.mxu0 0.0
        %365 = vmatpush1.msra.mxu0 0.0
        %366 = vmatprep.subr.mxu0 %v334
        %367 = vmatpush1.msra.mxu0 %v332
        %368 = vmatprep.subr.mxu0 0.0
        %369 = vmatpush2.msra.mxu0 0.0
        %370 = vmatprep.subr.mxu0 0.0
        %371 = vmatpush2.msra.mxu0 0.0
        %372 = vmatprep.subr.mxu0 0.0
        %373 = vmatpush2.msra.mxu0 0.0
        %374 = vmatprep.subr.mxu0 0.0
        %375 = vmatpush2.msra.mxu0 0.0
        %376 = vmatprep.subr.mxu0 0.0
        %377 = vmatpush2.msra.mxu0 0.0
        %378 = vmatprep.subr.mxu0 0.0
        %379 = vmatpush2.msra.mxu0 0.0
        %380 = vmatprep.subr.mxu0 0.0
        %381 = vmatpush2.msra.mxu0 0.0
        %382 = vmatprep.subr.mxu0 0.0
        %383 = vmatpush2.msra.mxu0 0.0
        %384 = vmatprep.subr.mxu0 0.0
        %385 = vmatpush2.msra.mxu0 0.0
        %386 = vmatprep.subr.mxu0 0.0
        %387 = vmatpush2.msra.mxu0 0.0
        %388 = vmatprep.subr.mxu0 0.0
        %389 = vmatpush2.msra.mxu0 0.0
        %390 = vmatprep.subr.mxu0 0.0
        %391 = vmatpush2.msra.mxu0 0.0
        %392 = vmatprep.subr.mxu0 0.0
        %393 = vmatpush2.msra.mxu0 0.0
        %394 = vmatprep.subr.mxu0 0.0
        %395 = vmatpush2.msra.mxu0 0.0
        %396 = vmatprep.subr.mxu0 0.0
        %397 = vmatpush2.msra.mxu0 0.0
        %398 = vmatprep.subr.mxu0 0.0
        %399 = vmatpush2.msra.mxu0 0.0
        %400 = vmatprep.mubr.f32.mxu0 0.0
        %401 = vmatmul.mubr.f32.gmra.mxu0 %v329
        %v402 = vpop.f32.mrf.mxu0
        %v403 = vadd.f32 0.0, %v402
        %v404 = vpop.f32.mrf.mxu0
        %v405 = vadd.f32 0.0, %v404
        %406 = vdwg.mxu0
        %v409 = vunpack.c.l.s4 1983009808
        %v410 = vunpack.c.0.s8 %v409
        %v411 = vlaneseq
        %v412 = vshrl.u32 %v411, 7
        %v413 = vsub.s32 %v410, %v412
        %v414 = vrot.slane %v319, %v413
        %v415 = vcombine.high %v414, %v414
        %vm416 = vcmask 15360
        %v418 = vsel %vm416, %v318, 0
        %vm420 = vcmask 1041408
        %v421 = vsel %vm420, %v414, 0
        %v423 = vsel %vm420, %v415, 0
        %425 = vmatprep.subr.mxu0 0.0
        %426 = vmatpush1.msra.mxu0 0.0
        %427 = vmatprep.subr.mxu0 0.0
        %428 = vmatpush1.msra.mxu0 0.0
        %429 = vmatprep.subr.mxu0 0.0
        %430 = vmatpush1.msra.mxu0 0.0
        %431 = vmatprep.subr.mxu0 0.0
        %432 = vmatpush1.msra.mxu0 0.0
        %433 = vmatprep.subr.mxu0 0.0
        %434 = vmatpush1.msra.mxu0 0.0
        %435 = vmatprep.subr.mxu0 0.0
        %436 = vmatpush1.msra.mxu0 0.0
        %437 = vmatprep.subr.mxu0 0.0
        %438 = vmatpush1.msra.mxu0 0.0
        %439 = vmatprep.subr.mxu0 0.0
        %440 = vmatpush1.msra.mxu0 0.0
        %441 = vmatprep.subr.mxu0 0.0
        %442 = vmatpush1.msra.mxu0 0.0
        %443 = vmatprep.subr.mxu0 0.0
        %444 = vmatpush1.msra.mxu0 0.0
        %445 = vmatprep.subr.mxu0 0.0
        %446 = vmatpush1.msra.mxu0 0.0
        %447 = vmatprep.subr.mxu0 0.0
        %448 = vmatpush1.msra.mxu0 0.0
        %449 = vmatprep.subr.mxu0 0.0
        %450 = vmatpush1.msra.mxu0 0.0
        %451 = vmatprep.subr.mxu0 0.0
        %452 = vmatpush1.msra.mxu0 0.0
        %453 = vmatprep.subr.mxu0 0.0
        %454 = vmatpush1.msra.mxu0 0.0
        %455 = vmatprep.subr.mxu0 %v423
        %456 = vmatpush1.msra.mxu0 %v421
        %457 = vmatprep.subr.mxu0 0.0
        %458 = vmatpush2.msra.mxu0 0.0
        %459 = vmatprep.subr.mxu0 0.0
        %460 = vmatpush2.msra.mxu0 0.0
        %461 = vmatprep.subr.mxu0 0.0
        %462 = vmatpush2.msra.mxu0 0.0
        %463 = vmatprep.subr.mxu0 0.0
        %464 = vmatpush2.msra.mxu0 0.0
        %465 = vmatprep.subr.mxu0 0.0
        %466 = vmatpush2.msra.mxu0 0.0
        %467 = vmatprep.subr.mxu0 0.0
        %468 = vmatpush2.msra.mxu0 0.0
        %469 = vmatprep.subr.mxu0 0.0
        %470 = vmatpush2.msra.mxu0 0.0
        %471 = vmatprep.subr.mxu0 0.0
        %472 = vmatpush2.msra.mxu0 0.0
        %473 = vmatprep.subr.mxu0 0.0
        %474 = vmatpush2.msra.mxu0 0.0
        %475 = vmatprep.subr.mxu0 0.0
        %476 = vmatpush2.msra.mxu0 0.0
        %477 = vmatprep.subr.mxu0 0.0
        %478 = vmatpush2.msra.mxu0 0.0
        %479 = vmatprep.subr.mxu0 0.0
        %480 = vmatpush2.msra.mxu0 0.0
        %481 = vmatprep.subr.mxu0 0.0
        %482 = vmatpush2.msra.mxu0 0.0
        %483 = vmatprep.subr.mxu0 0.0
        %484 = vmatpush2.msra.mxu0 0.0
        %485 = vmatprep.subr.mxu0 0.0
        %486 = vmatpush2.msra.mxu0 0.0
        %487 = vmatprep.subr.mxu0 0.0
        %488 = vmatpush2.msra.mxu0 0.0
        %489 = vmatprep.mubr.f32.mxu0 0.0
        %490 = vmatmul.mubr.f32.gmra.mxu0 %v418
        %v491 = vpop.f32.mrf.mxu0
        %v492 = vadd.f32 %v403, %v491
        %v493 = vpop.f32.mrf.mxu0
        %v494 = vadd.f32 %v405, %v493
        %495 = vdwg.mxu0
        %v496 = vld [vmem:[%s287] sm:$0xf]
        %v497 = vld [vmem:[%s4] sm:$0xff]
        %499 = vset.pattern.permute.xlu0 0
        %500 = vperm.xlu0 %499, %v497
        %v501 = vpop.permute.xlu0 %500
        %v504 = vlaneseq
        %v505 = vshrl.u32 %v504, 7
        %v506 = vsub.s32 0, %v505
        %v507 = vrot.slane %v496, %v506
        %v508 = vlaneseq
        %v509 = vshrl.u32 %v508, 7
        %v510 = vsub.s32 2, %v509
        %v511 = vrot.slane %v496, %v510
        %v514 = vlaneseq
        %v515 = vshrl.u32 %v514, 7
        %v516 = vsub.s32 0, %v515
        %v517 = vrot.slane %v507, %v516
        %v518 = vlaneseq
        %v519 = vshrl.u32 %v518, 7
        %v520 = vsub.s32 0, %v519
        %v521 = vrot.slane %v511, %v520
        %v522 = vmul.f32 %v501, %v517
        %v523 = vmul.f32 %v501, %v521
        %v524 = vadd.f32 %v492, %v522
        %v525 = vadd.f32 %v494, %v523
        %526 = vset.pattern.permute.xlu0 1
        %527 = vperm.xlu0 %526, %v497
        %v528 = vpop.permute.xlu0 %527
        %v530 = vlaneseq
        %v531 = vshrl.u32 %v530, 7
        %v532 = vsub.s32 1, %v531
        %v533 = vrot.slane %v496, %v532
        %v534 = vlaneseq
        %v535 = vshrl.u32 %v534, 7
        %v536 = vsub.s32 3, %v535
        %v537 = vrot.slane %v496, %v536
        %v540 = vlaneseq
        %v541 = vshrl.u32 %v540, 7
        %v542 = vsub.s32 1, %v541
        %v543 = vrot.slane %v533, %v542
        %v544 = vlaneseq
        %v545 = vshrl.u32 %v544, 7
        %v546 = vsub.s32 1, %v545
        %v547 = vrot.slane %v537, %v546
        %v548 = vmul.f32 %v528, %v543
        %v549 = vmul.f32 %v528, %v547
        %v550 = vadd.f32 %v524, %v548
        %v551 = vadd.f32 %v525, %v549
        %v552 = vld [vmem:[%s5] sm:$0xff]
        %554 = vset.pattern.permute.xlu0 0
        %555 = vperm.xlu0 %554, %v552
        %v556 = vpop.permute.xlu0 %555
        %v558 = vadd.f32 %v550, %v556
        %v559 = vadd.f32 %v551, %v556
        %v560 = vxor.u32 %v558, 2147483648
        %v561 = vxor.u32 %v559, 2147483648
        %v562 = vmul.f32 %v560, 1.442695
        %v563 = vpow.pop %v562
        %v564 = vmul.f32 %v561, 1.442695
        %v565 = vpow.pop %v564
        %v566 = vadd.f32 %v563, 1.0
        %v567 = vadd.f32 %v565, 1.0
        %v568 = vrcp.pop %v566
        %v569 = vmul.f32 1.0, %v568
        %v570 = vrcp.pop %v567
        %v571 = vmul.f32 1.0, %v570
        %v572 = vmul.f32 %v569, %v558
        %v573 = vmul.f32 %v571, %v559
        %574 = vst [vmem:[%s282] sm:$0xff] %v572
        %575 = vst [vmem:[%s282 + $0x8] sm:$0xff] %v573
        %s576 = sand.u32 %s167, 1
        %s577 = scalar_lea.sflag [#allocation5], %s576
        %s578 = sand.u32 %s167, 1
        %s579 = smul.addr %s578, 16
        %s580 = scalar_lea.vmem [#allocation6], %s579
        // Predicated region
        $region49: #{tpu_custom_call.1} parent=43 // pred_check
          %p581 = pneg %p177
        $region50: #{tpu_custom_call.1} parent=43 // pred_check_branch
          %583 = sbr.rel (%p581) target = $region52
        $region51: #{tpu_custom_call.1} parent=43 // pred_region
          %s585 = ssub.s32 256, 256
          %586 = vsyncadd %s577, %s585
          %s587 = smul.addr %s23, 2
          %s588 = smul.addr %s587, 128
          %s589 = scalar_lea.hbm %s6, %s588
          %s591 = sshll.u32 %s580, 4
          %s592 = int_to_ptr.vmem [resolvable:$true] %s591
          %594 = dma.vmem_to_hbm [thread:$0]  %s592, 256, %s589, %s577
        $region52: #{tpu_custom_call.1} parent=43 // pred_fallthru
          _
      $region44: #{tpu_custom_call.1} parent=5 // pred_fallthru
        _
      %p595 = scmp.le.s32.totalorder 2, %s18
      // Predicated region
      $region53: #{tpu_custom_call.1} parent=5 // pred_check
        %p596 = pneg %p595
      $region54: #{tpu_custom_call.1} parent=5 // pred_check_branch
        %598 = sbr.rel (%p596) target = $region56
      $region55: #{tpu_custom_call.1} parent=5 // pred_region
        %s599 = ssub.s32 %s18, 2
        // Predicated region
        $region57: #{tpu_custom_call.1} parent=55 // pred_check
          %p600 = pneg %p183
        $region58: #{tpu_custom_call.1} parent=55 // pred_check_branch
          %602 = sbr.rel (%p600) target = $region60
        $region59: #{tpu_custom_call.1} parent=55 // pred_region
          %s603 = sand.u32 %s168, 1
          %s604 = scalar_lea.sflag [#allocation5], %s603
          %s605 = sand.u32 %s168, 1
          %s606 = smul.addr %s605, 16
          %s607 = scalar_lea.vmem [#allocation6], %s606
          %608 = dma.done %s604, 256
        $region60: #{tpu_custom_call.1} parent=55 // pred_fallthru
          _
      $region56: #{tpu_custom_call.1} parent=5 // pred_fallthru
        _
    $region6: #{tpu_custom_call.1} parent=1 // loop_footer
      %s22 = sadd.s32 1, %s18
    $region7: #{tpu_custom_call.1} parent=1 // loop_footer_branch
      %17 = sbr.rel target = $region3
    $region8: #{tpu_custom_call.1} parent=1 // loop_exit
      _
    %609 = vsyncpa [#allocation4], 1
    %s610 = scalar_lea.sflag [#allocation4], 1
    %611 = vsyncpa %s610, 1
    %612 = vsyncpa [#allocation5], 1
    %s613 = scalar_lea.sflag [#allocation5], 1
    %614 = vsyncpa %s613, 1

</llo_original>
